<compile_context>
chip_gen: v5e
topology: v5e:2x2
jax: 0.10.0
libtpu: 0.0.40
codegen_flags: <defaults>
</compile_context>

<pallas_src>
import jax
import jax.numpy as jnp
from jax.experimental import pallas as pl
from jax.experimental.pallas import tpu as pltpu

LANE = 128
SUBLANE = 8


def _make_kernel(tile_rows, steps_per_chunk, rows, needs_mask):
    def kernel(x_ref, p_ref, y_ref, o_ref):
        i = pl.program_id(1)

        @pl.when(i == 0)
        def _():
            o_ref[...] = jnp.zeros_like(o_ref)

        # Cast in-kernel so non-f32 (e.g. bf16) inputs stream at native width.
        x = x_ref[...].astype(jnp.float32)
        p = p_ref[...].astype(jnp.float32)
        y = y_ref[...].astype(jnp.float32)
        diff = jnp.abs(x * p - y)

        if needs_mask:  # static gate: only emitted when a ragged tail exists
            c = pl.program_id(0)
            blk = c * steps_per_chunk + i
            row0 = blk * tile_rows
            row_ids = row0 + jax.lax.broadcasted_iota(
                jnp.int32, (tile_rows, LANE), 0
            )
            diff = jnp.where(row_ids < rows, diff, 0.0)

        # Sublane-group partial sums: pure VPU vreg adds, no per-step
        # cross-lane reduce and no scalar read-modify-write.
        partial = diff.reshape(tile_rows // SUBLANE, SUBLANE, LANE).sum(axis=0)
        o_ref[...] += partial

    return kernel


def my_loss(x, predict, y, *, tile_rows=2048):
    """Computes sum(|x * predict - y|) with a Pallas TPU streaming reduction."""
    assert x.shape == predict.shape == y.shape
    n = x.size
    chunk_elems = SUBLANE * LANE  # 1024

    def to_slab(a):
        af = a.reshape(-1)
        pad = (-n) % chunk_elems
        if pad:
            # At most 1023 zero elements; |0*0 - 0| = 0 so padding is inert.
            af = jnp.pad(af, (0, pad))
        return af.reshape(-1, LANE)

    x2, p2, y2 = to_slab(x), to_slab(predict), to_slab(y)
    rows = x2.shape[0]  # multiple of 8

    # Large tiles amortize the ~0.35 us/step pipeline overhead; clamp to data.
    tile_rows = max(SUBLANE, min(tile_rows, rows))
    tile_rows -= tile_rows % SUBLANE
    total_steps = pl.cdiv(rows, tile_rows)

    # Two independent chunks on a leading "parallel" axis -> megacore (v7x)
    # can shard the row loop across both TensorCores; harmless on v5e/v6e.
    num_chunks = 2 if total_steps >= 2 else 1
    steps_per_chunk = pl.cdiv(total_steps, num_chunks)
    # Mask needed if any block can contain rows >= `rows` (grid tail or a
    # duplicated block from an uneven chunk split).
    needs_mask = num_chunks * steps_per_chunk * tile_rows > rows

    def in_map(c, i):
        blk = c * steps_per_chunk + i
        # Clamp fully-out-of-range duplicate blocks (their contribution is
        # zeroed by the in-kernel row mask).
        return (jnp.minimum(blk, total_steps - 1), 0)

    in_spec = pl.BlockSpec((tile_rows, LANE), in_map)
    out_spec = pl.BlockSpec((None, SUBLANE, LANE), lambda c, i: (c, 0, 0))

    kernel = _make_kernel(tile_rows, steps_per_chunk, rows, needs_mask)

    partials = pl.pallas_call(
        kernel,
        out_shape=jax.ShapeDtypeStruct((num_chunks, SUBLANE, LANE), jnp.float32),
        grid_spec=pltpu.PrefetchScalarGridSpec(
            num_scalar_prefetch=0,
            grid=(num_chunks, steps_per_chunk),
            in_specs=[in_spec, in_spec, in_spec],
            out_specs=out_spec,
        ),
        compiler_params=pltpu.CompilerParams(
            dimension_semantics=("parallel", "arbitrary"),
            # 3 inputs x 2 pipeline buffers x tile_rows x 128 x 4B (f32)
            # ~= tile_rows * 3 KiB -> ~6 MiB at tile_rows=2048; fits every
            # generation's scoped VMEM with headroom.
            vmem_limit_bytes=32 * 1024 * 1024,
        ),
    )(x2, p2, y2)

    # Tiny final cross-lane/chunk reduction (<= 2048 f32) outside the kernel.
    return jnp.sum(partials)


if __name__ == "__main__":
    key = jax.random.PRNGKey(0)

    def make(shape, k):
        kx, kp, ky = jax.random.split(k, 3)
        return (
            jax.random.normal(kx, shape, dtype=jnp.float32),
            jax.random.normal(kp, shape, dtype=jnp.float32),
            jax.random.normal(ky, shape, dtype=jnp.float32),
        )

    # Primary case: NCHW-like small shape.
    x, predict, y = make((2, 4, 16, 16), key)
    loss = my_loss(x, predict, y)
    jax.block_until_ready(loss)
    ref = jnp.sum(jnp.abs(x * predict - y))
    assert jnp.allclose(loss, ref, rtol=1e-5, atol=1e-5), (loss, ref)

    # Exercise the parallel-chunk split + ragged-tail masking path.
    x2, p2, y2 = make((3, 4, 16, 16), jax.random.PRNGKey(1))
    loss2 = my_loss(x2, p2, y2, tile_rows=8)
    jax.block_until_ready(loss2)
    ref2 = jnp.sum(jnp.abs(x2 * p2 - y2))
    assert jnp.allclose(loss2, ref2, rtol=1e-5, atol=1e-5), (loss2, ref2)

    # Exercise the tiny pad-to-lane path (size not a multiple of 1024).
    x3, p3, y3 = make((2, 3, 5, 7), jax.random.PRNGKey(2))
    loss3 = my_loss(x3, p3, y3)
    jax.block_until_ready(loss3)
    ref3 = jnp.sum(jnp.abs(x3 * p3 - y3))
    assert jnp.allclose(loss3, ref3, rtol=1e-5, atol=1e-5), (loss3, ref3)

    print("KERNEL_OK")
</pallas_src>

<mosaic_0001>
module attributes {stable_mosaic.version = 11 : i64} {
  func.func @kernel(%arg0: i32, %arg1: i32, %arg2: memref<16x128xf32, #tpu.memory_space<vmem>>, %arg3: memref<16x128xf32, #tpu.memory_space<vmem>>, %arg4: memref<16x128xf32, #tpu.memory_space<vmem>>, %arg5: memref<1x8x128xf32, #tpu.memory_space<vmem>>) attributes {dimension_semantics = [#tpu.dimension_semantics<parallel>, #tpu.dimension_semantics<arbitrary>], iteration_bounds = array<i64: 1, 1>, scalar_prefetch = 0 : i64, scratch_operands = 0 : i64, tpu.core_type = #tpu.core_type<tc>, window_params = [{transform_indices = @transform_0, window_bounds = array<i64: 16, 128>}, {transform_indices = @transform_1, window_bounds = array<i64: 16, 128>}, {transform_indices = @transform_2, window_bounds = array<i64: 16, 128>}, {transform_indices = @transform_3, window_bounds = array<i64: 1, 8, 128>}]} {
    %c0_i32 = arith.constant 0 : i32
    %0 = arith.cmpi eq, %arg1, %c0_i32 : i32
    %1 = arith.extui %0 : i1 to i32
    %c0_i32_0 = arith.constant 0 : i32
    %2 = arith.cmpi ne, %1, %c0_i32_0 : i32
    scf.if %2 {
      %cst_12 = arith.constant 0.000000e+00 : f32
      %17 = vector.broadcast %cst_12 : f32 to vector<8x128xf32>
      %c0_13 = arith.constant 0 : index
      %c0_14 = arith.constant 0 : index
      %c0_15 = arith.constant 0 : index
      %18 = vector.load %arg5[%c0_13, %c0_14, %c0_15] : memref<1x8x128xf32, #tpu.memory_space<vmem>>, vector<1x8x128xf32>
      %19 = vector.shape_cast %18 : vector<1x8x128xf32> to vector<8x128xf32>
      %20 = vector.shape_cast %17 : vector<8x128xf32> to vector<1x8x128xf32>
      tpu.vector_store %arg5[%c0_13, %c0_14, %c0_15], %20 {strides = array<i32>} : memref<1x8x128xf32, #tpu.memory_space<vmem>>, vector<1x8x128xf32>,
    } else {
    }
    %c0 = arith.constant 0 : index
    %c0_1 = arith.constant 0 : index
    %3 = vector.load %arg2[%c0, %c0_1] : memref<16x128xf32, #tpu.memory_space<vmem>>, vector<16x128xf32>
    %c0_2 = arith.constant 0 : index
    %c0_3 = arith.constant 0 : index
    %4 = vector.load %arg3[%c0_2, %c0_3] : memref<16x128xf32, #tpu.memory_space<vmem>>, vector<16x128xf32>
    %c0_4 = arith.constant 0 : index
    %c0_5 = arith.constant 0 : index
    %5 = vector.load %arg4[%c0_4, %c0_5] : memref<16x128xf32, #tpu.memory_space<vmem>>, vector<16x128xf32>
    %6 = arith.mulf %3, %4 : vector<16x128xf32>
    %7 = arith.subf %6, %5 : vector<16x128xf32>
    %8 = math.absf %7 : vector<16x128xf32>
    %9 = vector.shape_cast %8 : vector<16x128xf32> to vector<2x8x128xf32>
    %cst = arith.constant dense<0.000000e+00> : vector<8x128xf32>
    %10 = vector.multi_reduction <add>, %9, %cst [0] : vector<2x8x128xf32> to vector<8x128xf32>
    %c0_6 = arith.constant 0 : index
    %c0_7 = arith.constant 0 : index
    %c0_8 = arith.constant 0 : index
    %11 = vector.load %arg5[%c0_6, %c0_7, %c0_8] : memref<1x8x128xf32, #tpu.memory_space<vmem>>, vector<1x8x128xf32>
    %12 = vector.shape_cast %11 : vector<1x8x128xf32> to vector<8x128xf32>
    %13 = arith.addf %12, %10 : vector<8x128xf32>
    %c0_9 = arith.constant 0 : index
    %c0_10 = arith.constant 0 : index
    %c0_11 = arith.constant 0 : index
    %14 = vector.load %arg5[%c0_9, %c0_10, %c0_11] : memref<1x8x128xf32, #tpu.memory_space<vmem>>, vector<1x8x128xf32>
    %15 = vector.shape_cast %14 : vector<1x8x128xf32> to vector<8x128xf32>
    %16 = vector.shape_cast %13 : vector<8x128xf32> to vector<1x8x128xf32>
    tpu.vector_store %arg5[%c0_9, %c0_10, %c0_11], %16 {strides = array<i32>} : memref<1x8x128xf32, #tpu.memory_space<vmem>>, vector<1x8x128xf32>,
    return
  }
  func.func @transform_0(%arg0: i32, %arg1: i32) -> (i32, i32) {
    %c1_i32 = arith.constant 1 : i32
    %0 = arith.muli %arg0, %c1_i32 : i32
    %1 = arith.addi %0, %arg1 : i32
    %c0_i32 = arith.constant 0 : i32
    %2 = arith.minsi %1, %c0_i32 : i32
    %c0_i32_0 = arith.constant 0 : i32
    %c0_i32_1 = arith.constant 0 : i32
    return %2, %c0_i32_0 : i32, i32
  }
  func.func @transform_1(%arg0: i32, %arg1: i32) -> (i32, i32) {
    %c1_i32 = arith.constant 1 : i32
    %0 = arith.muli %arg0, %c1_i32 : i32
    %1 = arith.addi %0, %arg1 : i32
    %c0_i32 = arith.constant 0 : i32
    %2 = arith.minsi %1, %c0_i32 : i32
    %c0_i32_0 = arith.constant 0 : i32
    %c0_i32_1 = arith.constant 0 : i32
    return %2, %c0_i32_0 : i32, i32
  }
  func.func @transform_2(%arg0: i32, %arg1: i32) -> (i32, i32) {
    %c1_i32 = arith.constant 1 : i32
    %0 = arith.muli %arg0, %c1_i32 : i32
    %1 = arith.addi %0, %arg1 : i32
    %c0_i32 = arith.constant 0 : i32
    %2 = arith.minsi %1, %c0_i32 : i32
    %c0_i32_0 = arith.constant 0 : i32
    %c0_i32_1 = arith.constant 0 : i32
    return %2, %c0_i32_0 : i32, i32
  }
  func.func @transform_3(%arg0: i32, %arg1: i32) -> (i32, i32, i32) {
    %c0_i32 = arith.constant 0 : i32
    %c0_i32_0 = arith.constant 0 : i32
    %c0_i32_1 = arith.constant 0 : i32
    return %arg0, %c0_i32, %c0_i32_0 : i32, i32, i32
  }
}

</mosaic_0001>

<llo_original>
// kernel: tpu_custom_call.1
$region0: #{tpu_custom_call.1}
  #allocation0 [shape = 'u32[]', space=smem, size = 0x4, offset = 0x4, fixed_abs, tag = 'smem constant byte address 0x4 - core index']
  #allocation1 [shape = 'u32[72,128]{1,0:T(1,128)}', space=vmem, size = 0x9000, scoped, tag = 'internal scratch']
  %s0 = inlined_call_operand.hbm [shape: f32[16,128], index: 0, kind: input, shape index: {}]
  %s1 = inlined_call_operand.hbm [shape: f32[16,128], index: 1, kind: input, shape index: {}]
  %s2 = inlined_call_operand.hbm [shape: f32[16,128], index: 2, kind: input, shape index: {}]
  %s3 = inlined_call_operand.hbm [shape: f32[1,8,128], index: 3, kind: output, shape index: {}]
  %s4 = sld [smem:[#allocation0]]
  $region38: #{tpu_custom_call.1} parent=0
    _
  %s6 = ssub.s32 1, %s4
  %s7 = scalar_select 0, %s6, %s4
  $region1: #{tpu_custom_call.1} parent=0
    #allocation2 [shape = 'u8[8192]{0}', space=vmem, size = 0x2000, scoped, tag = 'input window, operand 0, single buffered']
    #allocation3 [shape = 's32[1]{0}', space=sflag, size = 0x4, scoped, tag = 'scoped memory for tpu_custom_call.1']
    #allocation4 [shape = 's32[1]{0}', space=sflag, size = 0x4, scoped, tag = 'scoped memory for tpu_custom_call.1']
    #allocation5 [shape = 'u8[8192]{0}', space=vmem, size = 0x2000, scoped, tag = 'input window, operand 1, single buffered']
    #allocation6 [shape = 's32[1]{0}', space=sflag, size = 0x4, scoped, tag = 'scoped memory for tpu_custom_call.1']
    #allocation7 [shape = 'u8[8192]{0}', space=vmem, size = 0x2000, scoped, tag = 'input window, operand 2, single buffered']
    #allocation8 [shape = 'u8[4096]{0}', space=vmem, size = 0x1000, scoped, tag = 'output window, operand 0, single buffered']
    %8 = vsyncpa [#allocation3], 0
    %9 = vsyncpa [#allocation6], 0
    %10 = vsyncpa [#allocation4], 0
    // Predicated region
    $region2: #{tpu_custom_call.1} parent=1 // pred_check
      _
    $region3: #{tpu_custom_call.1} parent=1 // pred_check_branch
      %12 = sbr.rel (0) target = $region5
    $region4: #{tpu_custom_call.1} parent=1 // pred_region
      %s13 = sadd.s32 0, 0
      %p14 = scmp.lt.s32.totalorder %s13, 0
      %s15 = scalar_select %p14, %s13, 0
      %s16 = smul.u32 2, %s15
      %18 = vsyncadd [#allocation3], 0
      %s19 = smul.addr %s16, 8
      %s20 = scalar_lea.hbm %s0, %s19
      %s21 = sshll.u32 %s20, 4
      %s22 = int_to_ptr.hbm [resolvable:$true] %s21
      %s23 = sshll.u32 [#allocation2], 4
      %s24 = int_to_ptr.vmem [resolvable:$true] %s23
      %29 = dma.hbm_to_vmem [thread:$0]  %s22, 256, %s24, [#allocation3], 128, 128, 8
    $region5: #{tpu_custom_call.1} parent=1 // pred_fallthru
      _
    // Predicated region
    $region6: #{tpu_custom_call.1} parent=1 // pred_check
      _
    $region7: #{tpu_custom_call.1} parent=1 // pred_check_branch
      %31 = sbr.rel (0) target = $region9
    $region8: #{tpu_custom_call.1} parent=1 // pred_region
      %s32 = sadd.s32 0, 0
      %p33 = scmp.lt.s32.totalorder %s32, 0
      %s34 = scalar_select %p33, %s32, 0
      %s35 = smul.u32 2, %s34
      %37 = vsyncadd [#allocation6], 0
      %s38 = smul.addr %s35, 8
      %s39 = scalar_lea.hbm %s1, %s38
      %s40 = sshll.u32 %s39, 4
      %s41 = int_to_ptr.hbm [resolvable:$true] %s40
      %s42 = sshll.u32 [#allocation5], 4
      %s43 = int_to_ptr.vmem [resolvable:$true] %s42
      %48 = dma.hbm_to_vmem [thread:$0]  %s41, 256, %s43, [#allocation6], 128, 128, 8
    $region9: #{tpu_custom_call.1} parent=1 // pred_fallthru
      _
    // Predicated region
    $region10: #{tpu_custom_call.1} parent=1 // pred_check
      _
    $region11: #{tpu_custom_call.1} parent=1 // pred_check_branch
      %50 = sbr.rel (0) target = $region13
    $region12: #{tpu_custom_call.1} parent=1 // pred_region
      %s51 = sadd.s32 0, 0
      %p52 = scmp.lt.s32.totalorder %s51, 0
      %s53 = scalar_select %p52, %s51, 0
      %s54 = smul.u32 2, %s53
      %56 = vsyncadd [#allocation6], 0
      %s57 = smul.addr %s54, 8
      %s58 = scalar_lea.hbm %s2, %s57
      %s59 = sshll.u32 %s58, 4
      %s60 = int_to_ptr.hbm [resolvable:$true] %s59
      %s61 = sshll.u32 [#allocation7], 4
      %s62 = int_to_ptr.vmem [resolvable:$true] %s61
      %67 = dma.hbm_to_vmem [thread:$0]  %s60, 256, %s62, [#allocation6], 128, 128, 8
    $region13: #{tpu_custom_call.1} parent=1 // pred_fallthru
      _
    // Predicated region
    $region14: #{tpu_custom_call.1} parent=1 // pred_check
      _
    $region15: #{tpu_custom_call.1} parent=1 // pred_check_branch
      %69 = sbr.rel (0) target = $region17
    $region16: #{tpu_custom_call.1} parent=1 // pred_region
      %71 = dma.done [#allocation3], 256
    $region17: #{tpu_custom_call.1} parent=1 // pred_fallthru
      _
    // Predicated region
    $region18: #{tpu_custom_call.1} parent=1 // pred_check
      _
    $region19: #{tpu_custom_call.1} parent=1 // pred_check_branch
      %73 = sbr.rel (0) target = $region21
    $region20: #{tpu_custom_call.1} parent=1 // pred_region
      %75 = dma.done [#allocation6], 256
    $region21: #{tpu_custom_call.1} parent=1 // pred_fallthru
      _
    // Predicated region
    $region22: #{tpu_custom_call.1} parent=1 // pred_check
      _
    $region23: #{tpu_custom_call.1} parent=1 // pred_check_branch
      %77 = sbr.rel (0) target = $region25
    $region24: #{tpu_custom_call.1} parent=1 // pred_region
      %79 = dma.done [#allocation6], 256
    $region25: #{tpu_custom_call.1} parent=1 // pred_fallthru
      _
    %s80 = sadd.s32 0, 0
    %p81 = scmp.lt.s32.totalorder %s80, 0
    %s82 = scalar_select %p81, %s80, 0
    %s83 = smul.u32 2, %s82
    %s84 = sadd.s32 0, 0
    %p85 = scmp.lt.s32.totalorder %s84, 0
    %s86 = scalar_select %p85, %s84, 0
    %s87 = smul.u32 2, %s86
    %s88 = sadd.s32 0, 0
    %p89 = scmp.lt.s32.totalorder %s88, 0
    %s90 = scalar_select %p89, %s88, 0
    %s91 = smul.u32 2, %s90
    %p92 = scmp.eq.s32.totalorder 0, 0
    // Predicated region
    $region26: #{tpu_custom_call.1} parent=1 // pred_check
      %p93 = pneg %p92
    $region27: #{tpu_custom_call.1} parent=1 // pred_check_branch
      %95 = sbr.rel (%p93) target = $region29
    $region28: #{tpu_custom_call.1} parent=1 // pred_region
      %96 = vst [vmem:[#allocation8] sm:$0xff] 0.0
    $region29: #{tpu_custom_call.1} parent=1 // pred_fallthru
      _
    %v97 = vld [vmem:[#allocation2] sm:$0xff]
    %v98 = vld [vmem:[#allocation2 + $0x8] sm:$0xff]
    %v99 = vld [vmem:[#allocation5] sm:$0xff]
    %v100 = vld [vmem:[#allocation5 + $0x8] sm:$0xff]
    %v101 = vld [vmem:[#allocation7] sm:$0xff]
    %v102 = vld [vmem:[#allocation7 + $0x8] sm:$0xff]
    %v103 = vmul.f32 %v97, %v99
    %v104 = vmul.f32 %v98, %v100
    %v105 = vsub.f32 %v103, %v101
    %v106 = vsub.f32 %v104, %v102
    %v107 = vand.u32 2147483647, %v105
    %v108 = vand.u32 2147483647, %v106
    %v109 = vadd.f32 %v107, %v108
    %v110 = vld [vmem:[#allocation8] sm:$0xff]
    %v111 = vadd.f32 %v110, %v109
    %112 = vst [vmem:[#allocation8] sm:$0xff] %v111
    // Predicated region
    $region30: #{tpu_custom_call.1} parent=1 // pred_check
      _
    $region31: #{tpu_custom_call.1} parent=1 // pred_check_branch
      %114 = sbr.rel (0) target = $region33
    $region32: #{tpu_custom_call.1} parent=1 // pred_region
      %116 = vsyncadd [#allocation4], 0
      %s118 = sshll.u32 [#allocation8], 4
      %s119 = int_to_ptr.vmem [resolvable:$true] %s118
      %s120 = sshll.u32 %s3, 4
      %s121 = int_to_ptr.hbm [resolvable:$true] %s120
      %123 = dma.vmem_to_hbm [thread:$0]  %s119, 128, %s121, [#allocation4]
    $region33: #{tpu_custom_call.1} parent=1 // pred_fallthru
      _
    // Predicated region
    $region34: #{tpu_custom_call.1} parent=1 // pred_check
      _
    $region35: #{tpu_custom_call.1} parent=1 // pred_check_branch
      %125 = sbr.rel (0) target = $region37
    $region36: #{tpu_custom_call.1} parent=1 // pred_region
      %127 = dma.done [#allocation4], 128
    $region37: #{tpu_custom_call.1} parent=1 // pred_fallthru
      _
    %128 = vsyncpa [#allocation3], 1
    %129 = vsyncpa [#allocation6], 1
    %130 = vsyncpa [#allocation4], 1

</llo_original>
